<compile_context>
chip_gen: v7x
topology: tpu7x:2x2x1
jax: 0.10.0
libtpu: 0.0.40
codegen_flags: <defaults>
</compile_context>

<pallas_src>
import jax
import jax.numpy as jnp
from jax import lax
from jax.experimental import pallas as pl
from jax.experimental.pallas import tpu as pltpu

LANE = 128
SUBLANE = 8
BN_EPS = 1e-5
_VMEM_LIMIT = 48 * 1024 * 1024


def _round_up(v, m):
    return (v + m - 1) // m * m


# ---------------------------------------------------------------------------
# Kernel 1: GINConv (eps=0, self-loop folded into A) -> MLP(Linear,ReLU,Linear)
#           -> outer ReLU, with fused per-block partial sum / sum-of-squares
#           (BatchNorm batch statistics) over the true (unpadded) rows.
#           Grid axis is fully "parallel": each block owns its stats slice.
# ---------------------------------------------------------------------------
def _gin_conv_kernel(nvalid_ref,                        # scalar prefetch (SMEM)
                     a_ref, hin_ref,                    # [tm, Np] bf16, [Np, Din] bf16
                     w1_ref, b1_ref, w2_ref, b2_ref,    # bf16 weights, f32 biases
                     h_out_ref, stats_ref):             # [tm, Dout] f32, [1, 2, Dout] f32
    i = pl.program_id(0)

    # Aggregation (A + I) @ h_in on the MXU: bf16 operands, f32 accumulate.
    agg = jnp.dot(a_ref[...], hin_ref[...], preferred_element_type=jnp.float32)

    # nn = Linear -> ReLU -> Linear, then the outer F.relu.  Elementwise in f32.
    z = jnp.dot(agg.astype(jnp.bfloat16), w1_ref[...],
                preferred_element_type=jnp.float32) + b1_ref[...]
    z = jnp.maximum(z, 0.0)
    z = jnp.dot(z.astype(jnp.bfloat16), w2_ref[...],
                preferred_element_type=jnp.float32) + b2_ref[...]
    h = jnp.maximum(z, 0.0)                              # [tm, Dout] f32

    h_out_ref[...] = h

    # Per-block partial BatchNorm statistics (mask padded rows past true count).
    tm = h.shape[0]
    row = i * tm + lax.broadcasted_iota(jnp.int32, (tm, 1), 0)
    hm = jnp.where(row < nvalid_ref[0], h, 0.0)
    psum = jnp.sum(hm, axis=0, keepdims=True)            # [1, Dout]
    psq = jnp.sum(hm * hm, axis=0, keepdims=True)        # [1, Dout]
    stats_ref[...] = jnp.concatenate([psum, psq], axis=0).reshape(1, 2, -1)


def _gin_conv_layer(nvalid, a, hin, w1, b1, w2, b2, *, tm):
    n_pad = a.shape[0]
    din = hin.shape[1]
    dhid = w1.shape[1]
    dout = w2.shape[1]
    nb = n_pad // tm

    flops = 2 * n_pad * (n_pad * din + din * dhid + dhid * dout)
    bytes_accessed = sum(int(t.size) * t.dtype.itemsize
                         for t in (a, hin, w1, b1, w2, b2))
    bytes_accessed += n_pad * dout * 4 + nb * 2 * dout * 4

    return pl.pallas_call(
        _gin_conv_kernel,
        out_shape=(jax.ShapeDtypeStruct((n_pad, dout), jnp.float32),
                   jax.ShapeDtypeStruct((nb, 2, dout), jnp.float32)),
        grid_spec=pltpu.PrefetchScalarGridSpec(
            num_scalar_prefetch=1,
            grid=(nb,),
            in_specs=[
                pl.BlockSpec((tm, n_pad), lambda i, n: (i, 0)),    # A row block (streamed)
                pl.BlockSpec((n_pad, din), lambda i, n: (0, 0)),   # h_in (resident)
                pl.BlockSpec((din, dhid), lambda i, n: (0, 0)),    # weights resident
                pl.BlockSpec((1, dhid), lambda i, n: (0, 0)),
                pl.BlockSpec((dhid, dout), lambda i, n: (0, 0)),
                pl.BlockSpec((1, dout), lambda i, n: (0, 0)),
            ],
            out_specs=[
                pl.BlockSpec((tm, dout), lambda i, n: (i, 0)),
                pl.BlockSpec((1, 2, dout), lambda i, n: (i, 0, 0)),  # per-block stats
            ],
        ),
        compiler_params=pltpu.CompilerParams(
            dimension_semantics=("parallel",),   # no carried output -> megacore OK
            vmem_limit_bytes=_VMEM_LIMIT,
        ),
        cost_estimate=pl.CostEstimate(flops=flops, transcendentals=0,
                                      bytes_accessed=bytes_accessed),
    )(nvalid, a, hin, w1, b1, w2, b2)


# ---------------------------------------------------------------------------
# Kernel 2: reduce partial stats and apply BatchNorm1d (training-mode batch
#           statistics: biased variance).
# ---------------------------------------------------------------------------
def _batchnorm_kernel(nvalid_ref, h_ref, stats_ref, gamma_ref, beta_ref, out_ref):
    inv_n = 1.0 / nvalid_ref[0].astype(jnp.float32)
    stats = jnp.sum(stats_ref[...], axis=0)                      # [2, D] f32
    mu = stats[0:1, :] * inv_n
    var = jnp.maximum(stats[1:2, :] * inv_n - mu * mu, 0.0)      # clamp E[x^2]-mu^2
    scale = gamma_ref[...] * lax.rsqrt(var + BN_EPS)
    shift = beta_ref[...] - mu * scale
    out_ref[...] = (h_ref[...] * scale + shift).astype(out_ref.dtype)


def _batchnorm_layer(nvalid, h, stats, gamma, beta, *, tm, out_dtype):
    n_pad, d = h.shape
    nb = stats.shape[0]
    return pl.pallas_call(
        _batchnorm_kernel,
        out_shape=jax.ShapeDtypeStruct((n_pad, d), out_dtype),
        grid_spec=pltpu.PrefetchScalarGridSpec(
            num_scalar_prefetch=1,
            grid=(n_pad // tm,),
            in_specs=[
                pl.BlockSpec((tm, d), lambda i, n: (i, 0)),
                pl.BlockSpec((nb, 2, d), lambda i, n: (0, 0, 0)),  # tiny, resident
                pl.BlockSpec((1, d), lambda i, n: (0, 0)),
                pl.BlockSpec((1, d), lambda i, n: (0, 0)),
            ],
            out_specs=pl.BlockSpec((tm, d), lambda i, n: (i, 0)),
        ),
        compiler_params=pltpu.CompilerParams(
            dimension_semantics=("parallel",),
            vmem_limit_bytes=_VMEM_LIMIT,
        ),
    )(nvalid, h, stats, gamma, beta)


# ---------------------------------------------------------------------------
# Wrapper: padding / dtype plumbing + the two GIN layers.
# ---------------------------------------------------------------------------
def _pad2(w, rows, cols):
    return jnp.zeros((rows, cols), w.dtype).at[: w.shape[0], : w.shape[1]].set(w)


@jax.jit
def gin_node_weight_encoder(x, adj, params):
    """x: [N, F] f32 node features; adj: [N, N] f32 dense adjacency, A[dst, src]."""
    n, f = x.shape
    dim = params["w1"].shape[1]
    out_dim = params["w4"].shape[1]

    tm = min(256, _round_up(n, SUBLANE))     # row tile (256-aligned for big graphs)
    n_pad = _round_up(n, tm)
    f_pad = _round_up(f, LANE)
    d_pad = _round_up(dim, LANE)
    o_pad = _round_up(out_dim, LANE)

    nvalid = jnp.full((1,), n, jnp.int32)

    # Fold the GIN self-term into the adjacency: A + I (real nodes only), pad to
    # the tiled shape, cast to bf16 (small integer edge counts are exact).
    a = jnp.zeros((n_pad, n_pad), jnp.float32).at[:n, :n].set(adj)
    a = a.at[jnp.arange(n), jnp.arange(n)].add(1.0).astype(jnp.bfloat16)

    x_p = _pad2(x, n_pad, f_pad).astype(jnp.bfloat16)

    w1 = _pad2(params["w1"], f_pad, d_pad).astype(jnp.bfloat16)
    b1 = _pad2(params["b1"], 1, d_pad)
    w2 = _pad2(params["w2"], d_pad, d_pad).astype(jnp.bfloat16)
    b2 = _pad2(params["b2"], 1, d_pad)
    g1 = _pad2(params["g1"], 1, d_pad)
    be1 = _pad2(params["be1"], 1, d_pad)
    w3 = _pad2(params["w3"], d_pad, d_pad).astype(jnp.bfloat16)
    b3 = _pad2(params["b3"], 1, d_pad)
    w4 = _pad2(params["w4"], d_pad, o_pad).astype(jnp.bfloat16)
    b4 = _pad2(params["b4"], 1, o_pad)
    g2 = _pad2(params["g2"], 1, o_pad)
    be2 = _pad2(params["be2"], 1, o_pad)

    # Layer 1: F.relu(conv1(x)) with fused BN stats, then bn1.
    h1, s1 = _gin_conv_layer(nvalid, a, x_p, w1, b1, w2, b2, tm=tm)
    h1 = _batchnorm_layer(nvalid, h1, s1, g1, be1, tm=tm, out_dtype=jnp.bfloat16)

    # Layer 2: F.relu(conv2(h1)) with fused BN stats, then bn2.
    h2, s2 = _gin_conv_layer(nvalid, a, h1, w3, b3, w4, b4, tm=tm)
    out = _batchnorm_layer(nvalid, h2, s2, g2, be2, tm=tm, out_dtype=jnp.float32)

    # Drop lane / row padding outside the kernels (lane-dense stores inside).
    return out[:n, :out_dim]


# ---------------------------------------------------------------------------
# Glue: parameters, dense adjacency, pure-JAX reference.
# ---------------------------------------------------------------------------
def make_params(key, num_features, dim, add_mask=False):
    out_dim = 3 if add_mask else 2
    ks = jax.random.split(key, 8)
    scale = 0.1
    # Linear weights stored as [in, out] (transposed vs torch's [out, in]).
    return {
        "w1": scale * jax.random.normal(ks[0], (num_features, dim), jnp.float32),
        "b1": scale * jax.random.normal(ks[1], (1, dim), jnp.float32),
        "w2": scale * jax.random.normal(ks[2], (dim, dim), jnp.float32),
        "b2": scale * jax.random.normal(ks[3], (1, dim), jnp.float32),
        "g1": jnp.ones((1, dim), jnp.float32),       # bn1 weight
        "be1": jnp.zeros((1, dim), jnp.float32),     # bn1 bias
        "w3": scale * jax.random.normal(ks[4], (dim, dim), jnp.float32),
        "b3": scale * jax.random.normal(ks[5], (1, dim), jnp.float32),
        "w4": scale * jax.random.normal(ks[6], (dim, out_dim), jnp.float32),
        "b4": scale * jax.random.normal(ks[7], (1, out_dim), jnp.float32),
        "g2": jnp.ones((1, out_dim), jnp.float32),   # bn2 weight
        "be2": jnp.zeros((1, out_dim), jnp.float32), # bn2 bias
    }


def dense_adjacency(edge_index, num_nodes):
    """edge_index [2, E] (row 0 = src, row 1 = dst) -> A with A[dst, src] = multiplicity."""
    # TODO(synk): for genuinely sparse graphs replace this densification + dense
    # A@X with a CSR gather-accumulate Pallas kernel (PrefetchScalarGridSpec).
    src, dst = edge_index[0], edge_index[1]
    a = jnp.zeros((num_nodes, num_nodes), jnp.float32)
    return a.at[dst, src].add(1.0)


def _reference_forward(x, adj, params):
    a = adj + jnp.eye(adj.shape[0], dtype=adj.dtype)

    def bn(h, g, b):
        mu = jnp.mean(h, axis=0, keepdims=True)
        var = jnp.mean(jnp.square(h - mu), axis=0, keepdims=True)
        return (h - mu) / jnp.sqrt(var + BN_EPS) * g + b

    h = a @ x
    h = jnp.maximum(h @ params["w1"] + params["b1"], 0.0)
    h = jnp.maximum(h @ params["w2"] + params["b2"], 0.0)
    h = bn(h, params["g1"], params["be1"])
    h2 = a @ h
    h2 = jnp.maximum(h2 @ params["w3"] + params["b3"], 0.0)
    h2 = jnp.maximum(h2 @ params["w4"] + params["b4"], 0.0)
    return bn(h2, params["g2"], params["be2"])


if __name__ == "__main__":
    key = jax.random.PRNGKey(0)
    k_x, k_e, k_p = jax.random.split(key, 3)

    num_nodes = 32
    num_features = 16
    dim = 32
    num_edges = 64

    x = jax.random.normal(k_x, (num_nodes, num_features), jnp.float32)
    edge_index = jax.random.randint(k_e, (2, num_edges), 0, num_nodes, jnp.int32)
    adj = dense_adjacency(edge_index, num_nodes)   # plain-JAX scatter-add glue
    params = make_params(k_p, num_features, dim, add_mask=False)

    out = jax.block_until_ready(gin_node_weight_encoder(x, adj, params))
    ref = _reference_forward(x, adj, params)

    assert out.shape == (num_nodes, 2) and out.dtype == jnp.float32
    assert bool(jnp.all(jnp.isfinite(out)))
    max_err = float(jnp.max(jnp.abs(out - ref)))
    assert max_err < 0.25, f"mismatch vs f32 reference: max abs err {max_err}"
    print("KERNEL_OK")
</pallas_src>

<mosaic_0001>
module attributes {stable_mosaic.version = 11 : i64} {
  func.func private @main(%arg0: i32) attributes {dimension_semantics = [#tpu.dimension_semantics<core_parallel>], iteration_bounds = array<i64: 2>, tpu.core_type = #tpu.core_type<sc_scalar_subcore>, window_params = []} {
    return
  }
}

module attributes {stable_mosaic.version = 11 : i64} {
  func.func private @main(%arg0: i32) attributes {dimension_semantics = [#tpu.dimension_semantics<core_parallel>], iteration_bounds = array<i64: 2>, tpu.core_type = #tpu.core_type<sc_scalar_subcore>, window_params = []} {
    return
  }
}

module attributes {stable_mosaic.version = 11 : i64} {
  func.func @_batchnorm_kernel(%arg0: i32, %arg1: memref<1xi32, #tpu.memory_space<smem>>, %arg2: memref<32x128xf32, #tpu.memory_space<vmem>>, %arg3: memref<1x2x128xf32, #tpu.memory_space<vmem>>, %arg4: memref<1x128xf32, #tpu.memory_space<vmem>>, %arg5: memref<1x128xf32, #tpu.memory_space<vmem>>, %arg6: memref<32x128xf32, #tpu.memory_space<vmem>>) attributes {dimension_semantics = [#tpu.dimension_semantics<parallel>], iteration_bounds = array<i64: 1>, scalar_prefetch = 1 : i64, scratch_operands = 0 : i64, tpu.core_type = #tpu.core_type<tc>, window_params = [{transform_indices = @transform_0, window_bounds = array<i64: 32, 128>}, {pipeline_mode = #tpu.pipeline_mode<synchronous>, transform_indices = @transform_1, window_bounds = array<i64: 1, 2, 128>}, {pipeline_mode = #tpu.pipeline_mode<synchronous>, transform_indices = @transform_2, window_bounds = array<i64: 1, 128>}, {pipeline_mode = #tpu.pipeline_mode<synchronous>, transform_indices = @transform_3, window_bounds = array<i64: 1, 128>}, {transform_indices = @transform_4, window_bounds = array<i64: 32, 128>}]} {
    %c0 = arith.constant 0 : index
    %0 = memref.load %arg1[%c0] : memref<1xi32, #tpu.memory_space<smem>>
    %1 = arith.sitofp %0 : i32 to f32
    %cst = arith.constant 1.000000e+00 : f32
    %2 = arith.divf %cst, %1 : f32
    %c0_0 = arith.constant 0 : index
    %c0_1 = arith.constant 0 : index
    %c0_2 = arith.constant 0 : index
    %3 = vector.load %arg3[%c0_0, %c0_1, %c0_2] : memref<1x2x128xf32, #tpu.memory_space<vmem>>, vector<1x2x128xf32>
    %cst_3 = arith.constant dense<0.000000e+00> : vector<2x128xf32>
    %4 = vector.multi_reduction <add>, %3, %cst_3 [0] : vector<1x2x128xf32> to vector<2x128xf32>
    %5 = vector.extract_strided_slice %4 {offsets = [0, 0], sizes = [1, 128], strides = [1, 1]} : vector<2x128xf32> to vector<1x128xf32>
    %6 = vector.broadcast %2 : f32 to vector<1x128xf32>
    %7 = arith.mulf %5, %6 : vector<1x128xf32>
    %8 = vector.extract_strided_slice %4 {offsets = [1, 0], sizes = [1, 128], strides = [1, 1]} : vector<2x128xf32> to vector<1x128xf32>
    %9 = vector.broadcast %2 : f32 to vector<1x128xf32>
    %10 = arith.mulf %8, %9 : vector<1x128xf32>
    %11 = arith.mulf %7, %7 : vector<1x128xf32>
    %12 = arith.subf %10, %11 : vector<1x128xf32>
    %cst_4 = arith.constant 0.000000e+00 : f32
    %13 = vector.broadcast %cst_4 : f32 to vector<1x128xf32>
    %14 = arith.maximumf %12, %13 : vector<1x128xf32>
    %c0_5 = arith.constant 0 : index
    %c0_6 = arith.constant 0 : index
    %15 = vector.load %arg4[%c0_5, %c0_6] : memref<1x128xf32, #tpu.memory_space<vmem>>, vector<1x128xf32>
    %cst_7 = arith.constant 9.99999974E-6 : f32
    %16 = vector.broadcast %cst_7 : f32 to vector<1x128xf32>
    %17 = arith.addf %14, %16 : vector<1x128xf32>
    %18 = math.rsqrt %17 : vector<1x128xf32>
    %19 = arith.mulf %15, %18 : vector<1x128xf32>
    %c0_8 = arith.constant 0 : index
    %c0_9 = arith.constant 0 : index
    %20 = vector.load %arg5[%c0_8, %c0_9] : memref<1x128xf32, #tpu.memory_space<vmem>>, vector<1x128xf32>
    %21 = arith.mulf %7, %19 : vector<1x128xf32>
    %22 = arith.subf %20, %21 : vector<1x128xf32>
    %c0_10 = arith.constant 0 : index
    %c0_11 = arith.constant 0 : index
    %23 = vector.load %arg2[%c0_10, %c0_11] : memref<32x128xf32, #tpu.memory_space<vmem>>, vector<32x128xf32>
    %24 = vector.broadcast %19 : vector<1x128xf32> to vector<32x128xf32>
    %25 = arith.mulf %23, %24 : vector<32x128xf32>
    %26 = vector.broadcast %22 : vector<1x128xf32> to vector<32x128xf32>
    %27 = arith.addf %25, %26 : vector<32x128xf32>
    %c0_12 = arith.constant 0 : index
    %c0_13 = arith.constant 0 : index
    %28 = vector.load %arg6[%c0_12, %c0_13] : memref<32x128xf32, #tpu.memory_space<vmem>>, vector<32x128xf32>
    tpu.vector_store %arg6[%c0_12, %c0_13], %27 {strides = array<i32>} : memref<32x128xf32, #tpu.memory_space<vmem>>, vector<32x128xf32>,
    return
  }
  func.func @transform_0(%arg0: i32, %arg1: memref<1xi32, #tpu.memory_space<smem>>) -> (i32, i32) {
    %c0_i32 = arith.constant 0 : i32
    %c0_i32_0 = arith.constant 0 : i32
    return %arg0, %c0_i32 : i32, i32
  }
  func.func @transform_1(%arg0: i32, %arg1: memref<1xi32, #tpu.memory_space<smem>>) -> (i32, i32, i32) {
    %c0_i32 = arith.constant 0 : i32
    %c0_i32_0 = arith.constant 0 : i32
    %c0_i32_1 = arith.constant 0 : i32
    %c0_i32_2 = arith.constant 0 : i32
    return %c0_i32, %c0_i32_0, %c0_i32_1 : i32, i32, i32
  }
  func.func @transform_2(%arg0: i32, %arg1: memref<1xi32, #tpu.memory_space<smem>>) -> (i32, i32) {
    %c0_i32 = arith.constant 0 : i32
    %c0_i32_0 = arith.constant 0 : i32
    %c0_i32_1 = arith.constant 0 : i32
    return %c0_i32, %c0_i32_0 : i32, i32
  }
  func.func @transform_3(%arg0: i32, %arg1: memref<1xi32, #tpu.memory_space<smem>>) -> (i32, i32) {
    %c0_i32 = arith.constant 0 : i32
    %c0_i32_0 = arith.constant 0 : i32
    %c0_i32_1 = arith.constant 0 : i32
    return %c0_i32, %c0_i32_0 : i32, i32
  }
  func.func @transform_4(%arg0: i32, %arg1: memref<1xi32, #tpu.memory_space<smem>>) -> (i32, i32) {
    %c0_i32 = arith.constant 0 : i32
    %c0_i32_0 = arith.constant 0 : i32
    return %arg0, %c0_i32 : i32, i32
  }
}

module attributes {stable_mosaic.version = 11 : i64} {
  func.func @_batchnorm_kernel(%arg0: i32, %arg1: memref<1xi32, #tpu.memory_space<smem>>, %arg2: memref<32x128xf32, #tpu.memory_space<vmem>>, %arg3: memref<1x2x128xf32, #tpu.memory_space<vmem>>, %arg4: memref<1x128xf32, #tpu.memory_space<vmem>>, %arg5: memref<1x128xf32, #tpu.memory_space<vmem>>, %arg6: memref<32x128xbf16, #tpu.memory_space<vmem>>) attributes {dimension_semantics = [#tpu.dimension_semantics<parallel>], iteration_bounds = array<i64: 1>, scalar_prefetch = 1 : i64, scratch_operands = 0 : i64, tpu.core_type = #tpu.core_type<tc>, window_params = [{transform_indices = @transform_0, window_bounds = array<i64: 32, 128>}, {pipeline_mode = #tpu.pipeline_mode<synchronous>, transform_indices = @transform_1, window_bounds = array<i64: 1, 2, 128>}, {pipeline_mode = #tpu.pipeline_mode<synchronous>, transform_indices = @transform_2, window_bounds = array<i64: 1, 128>}, {pipeline_mode = #tpu.pipeline_mode<synchronous>, transform_indices = @transform_3, window_bounds = array<i64: 1, 128>}, {transform_indices = @transform_4, window_bounds = array<i64: 32, 128>}]} {
    %c0 = arith.constant 0 : index
    %0 = memref.load %arg1[%c0] : memref<1xi32, #tpu.memory_space<smem>>
    %1 = arith.sitofp %0 : i32 to f32
    %cst = arith.constant 1.000000e+00 : f32
    %2 = arith.divf %cst, %1 : f32
    %c0_0 = arith.constant 0 : index
    %c0_1 = arith.constant 0 : index
    %c0_2 = arith.constant 0 : index
    %3 = vector.load %arg3[%c0_0, %c0_1, %c0_2] : memref<1x2x128xf32, #tpu.memory_space<vmem>>, vector<1x2x128xf32>
    %cst_3 = arith.constant dense<0.000000e+00> : vector<2x128xf32>
    %4 = vector.multi_reduction <add>, %3, %cst_3 [0] : vector<1x2x128xf32> to vector<2x128xf32>
    %5 = vector.extract_strided_slice %4 {offsets = [0, 0], sizes = [1, 128], strides = [1, 1]} : vector<2x128xf32> to vector<1x128xf32>
    %6 = vector.broadcast %2 : f32 to vector<1x128xf32>
    %7 = arith.mulf %5, %6 : vector<1x128xf32>
    %8 = vector.extract_strided_slice %4 {offsets = [1, 0], sizes = [1, 128], strides = [1, 1]} : vector<2x128xf32> to vector<1x128xf32>
    %9 = vector.broadcast %2 : f32 to vector<1x128xf32>
    %10 = arith.mulf %8, %9 : vector<1x128xf32>
    %11 = arith.mulf %7, %7 : vector<1x128xf32>
    %12 = arith.subf %10, %11 : vector<1x128xf32>
    %cst_4 = arith.constant 0.000000e+00 : f32
    %13 = vector.broadcast %cst_4 : f32 to vector<1x128xf32>
    %14 = arith.maximumf %12, %13 : vector<1x128xf32>
    %c0_5 = arith.constant 0 : index
    %c0_6 = arith.constant 0 : index
    %15 = vector.load %arg4[%c0_5, %c0_6] : memref<1x128xf32, #tpu.memory_space<vmem>>, vector<1x128xf32>
    %cst_7 = arith.constant 9.99999974E-6 : f32
    %16 = vector.broadcast %cst_7 : f32 to vector<1x128xf32>
    %17 = arith.addf %14, %16 : vector<1x128xf32>
    %18 = math.rsqrt %17 : vector<1x128xf32>
    %19 = arith.mulf %15, %18 : vector<1x128xf32>
    %c0_8 = arith.constant 0 : index
    %c0_9 = arith.constant 0 : index
    %20 = vector.load %arg5[%c0_8, %c0_9] : memref<1x128xf32, #tpu.memory_space<vmem>>, vector<1x128xf32>
    %21 = arith.mulf %7, %19 : vector<1x128xf32>
    %22 = arith.subf %20, %21 : vector<1x128xf32>
    %c0_10 = arith.constant 0 : index
    %c0_11 = arith.constant 0 : index
    %23 = vector.load %arg2[%c0_10, %c0_11] : memref<32x128xf32, #tpu.memory_space<vmem>>, vector<32x128xf32>
    %24 = vector.broadcast %19 : vector<1x128xf32> to vector<32x128xf32>
    %25 = arith.mulf %23, %24 : vector<32x128xf32>
    %26 = vector.broadcast %22 : vector<1x128xf32> to vector<32x128xf32>
    %27 = arith.addf %25, %26 : vector<32x128xf32>
    %28 = arith.truncf %27 : vector<32x128xf32> to vector<32x128xbf16>
    %c0_12 = arith.constant 0 : index
    %c0_13 = arith.constant 0 : index
    %29 = vector.load %arg6[%c0_12, %c0_13] : memref<32x128xbf16, #tpu.memory_space<vmem>>, vector<32x128xbf16>
    tpu.vector_store %arg6[%c0_12, %c0_13], %28 {strides = array<i32>} : memref<32x128xbf16, #tpu.memory_space<vmem>>, vector<32x128xbf16>,
    return
  }
  func.func @transform_0(%arg0: i32, %arg1: memref<1xi32, #tpu.memory_space<smem>>) -> (i32, i32) {
    %c0_i32 = arith.constant 0 : i32
    %c0_i32_0 = arith.constant 0 : i32
    return %arg0, %c0_i32 : i32, i32
  }
  func.func @transform_1(%arg0: i32, %arg1: memref<1xi32, #tpu.memory_space<smem>>) -> (i32, i32, i32) {
    %c0_i32 = arith.constant 0 : i32
    %c0_i32_0 = arith.constant 0 : i32
    %c0_i32_1 = arith.constant 0 : i32
    %c0_i32_2 = arith.constant 0 : i32
    return %c0_i32, %c0_i32_0, %c0_i32_1 : i32, i32, i32
  }
  func.func @transform_2(%arg0: i32, %arg1: memref<1xi32, #tpu.memory_space<smem>>) -> (i32, i32) {
    %c0_i32 = arith.constant 0 : i32
    %c0_i32_0 = arith.constant 0 : i32
    %c0_i32_1 = arith.constant 0 : i32
    return %c0_i32, %c0_i32_0 : i32, i32
  }
  func.func @transform_3(%arg0: i32, %arg1: memref<1xi32, #tpu.memory_space<smem>>) -> (i32, i32) {
    %c0_i32 = arith.constant 0 : i32
    %c0_i32_0 = arith.constant 0 : i32
    %c0_i32_1 = arith.constant 0 : i32
    return %c0_i32, %c0_i32_0 : i32, i32
  }
  func.func @transform_4(%arg0: i32, %arg1: memref<1xi32, #tpu.memory_space<smem>>) -> (i32, i32) {
    %c0_i32 = arith.constant 0 : i32
    %c0_i32_0 = arith.constant 0 : i32
    return %arg0, %c0_i32 : i32, i32
  }
}

module attributes {stable_mosaic.version = 11 : i64} {
  func.func @_gin_conv_kernel(%arg0: i32, %arg1: memref<1xi32, #tpu.memory_space<smem>>, %arg2: memref<32x32xbf16, #tpu.memory_space<vmem>>, %arg3: memref<32x128xbf16, #tpu.memory_space<vmem>>, %arg4: memref<128x128xbf16, #tpu.memory_space<vmem>>, %arg5: memref<1x128xf32, #tpu.memory_space<vmem>>, %arg6: memref<128x128xbf16, #tpu.memory_space<vmem>>, %arg7: memref<1x128xf32, #tpu.memory_space<vmem>>, %arg8: memref<32x128xf32, #tpu.memory_space<vmem>>, %arg9: memref<1x2x128xf32, #tpu.memory_space<vmem>>) attributes {dimension_semantics = [#tpu.dimension_semantics<parallel>], iteration_bounds = array<i64: 1>, scalar_prefetch = 1 : i64, scratch_operands = 0 : i64, tpu.core_type = #tpu.core_type<tc>, window_params = [{transform_indices = @transform_0, window_bounds = array<i64: 32, 32>}, {pipeline_mode = #tpu.pipeline_mode<synchronous>, transform_indices = @transform_1, window_bounds = array<i64: 32, 128>}, {pipeline_mode = #tpu.pipeline_mode<synchronous>, transform_indices = @transform_2, window_bounds = array<i64: 128, 128>}, {pipeline_mode = #tpu.pipeline_mode<synchronous>, transform_indices = @transform_3, window_bounds = array<i64: 1, 128>}, {pipeline_mode = #tpu.pipeline_mode<synchronous>, transform_indices = @transform_4, window_bounds = array<i64: 128, 128>}, {pipeline_mode = #tpu.pipeline_mode<synchronous>, transform_indices = @transform_5, window_bounds = array<i64: 1, 128>}, {transform_indices = @transform_6, window_bounds = array<i64: 32, 128>}, {transform_indices = @transform_7, window_bounds = array<i64: 1, 2, 128>}]} {
    %c0 = arith.constant 0 : index
    %c0_0 = arith.constant 0 : index
    %0 = vector.load %arg2[%c0, %c0_0] : memref<32x32xbf16, #tpu.memory_space<vmem>>, vector<32x32xbf16>
    %c0_1 = arith.constant 0 : index
    %c0_2 = arith.constant 0 : index
    %1 = vector.load %arg3[%c0_1, %c0_2] : memref<32x128xbf16, #tpu.memory_space<vmem>>, vector<32x128xbf16>
    %cst = arith.constant dense<0.000000e+00> : vector<32x128xf32>
    %2 = tpu.matmul %0, %1, %cst {dimension_numbers = #tpu.dot_dimension_numbers<[1], [0], [0], [1], [0, 0, 1, 1], [], []>} : vector<32x32xbf16>, vector<32x128xbf16>, vector<32x128xf32> -> vector<32x128xf32>
    %3 = arith.truncf %2 : vector<32x128xf32> to vector<32x128xbf16>
    %c0_3 = arith.constant 0 : index
    %c0_4 = arith.constant 0 : index
    %4 = vector.load %arg4[%c0_3, %c0_4] : memref<128x128xbf16, #tpu.memory_space<vmem>>, vector<128x128xbf16>
    %cst_5 = arith.constant dense<0.000000e+00> : vector<32x128xf32>
    %5 = tpu.matmul %3, %4, %cst_5 {dimension_numbers = #tpu.dot_dimension_numbers<[1], [0], [0], [1], [0, 0, 1, 1], [], []>} : vector<32x128xbf16>, vector<128x128xbf16>, vector<32x128xf32> -> vector<32x128xf32>
    %c0_6 = arith.constant 0 : index
    %c0_7 = arith.constant 0 : index
    %6 = vector.load %arg5[%c0_6, %c0_7] : memref<1x128xf32, #tpu.memory_space<vmem>>, vector<1x128xf32>
    %7 = vector.broadcast %6 : vector<1x128xf32> to vector<32x128xf32>
    %8 = arith.addf %5, %7 : vector<32x128xf32>
    %cst_8 = arith.constant 0.000000e+00 : f32
    %9 = vector.broadcast %cst_8 : f32 to vector<32x128xf32>
    %10 = arith.maximumf %8, %9 : vector<32x128xf32>
    %11 = arith.truncf %10 : vector<32x128xf32> to vector<32x128xbf16>
    %c0_9 = arith.constant 0 : index
    %c0_10 = arith.constant 0 : index
    %12 = vector.load %arg6[%c0_9, %c0_10] : memref<128x128xbf16, #tpu.memory_space<vmem>>, vector<128x128xbf16>
    %cst_11 = arith.constant dense<0.000000e+00> : vector<32x128xf32>
    %13 = tpu.matmul %11, %12, %cst_11 {dimension_numbers = #tpu.dot_dimension_numbers<[1], [0], [0], [1], [0, 0, 1, 1], [], []>} : vector<32x128xbf16>, vector<128x128xbf16>, vector<32x128xf32> -> vector<32x128xf32>
    %c0_12 = arith.constant 0 : index
    %c0_13 = arith.constant 0 : index
    %14 = vector.load %arg7[%c0_12, %c0_13] : memref<1x128xf32, #tpu.memory_space<vmem>>, vector<1x128xf32>
    %15 = vector.broadcast %14 : vector<1x128xf32> to vector<32x128xf32>
    %16 = arith.addf %13, %15 : vector<32x128xf32>
    %cst_14 = arith.constant 0.000000e+00 : f32
    %17 = vector.broadcast %cst_14 : f32 to vector<32x128xf32>
    %18 = arith.maximumf %16, %17 : vector<32x128xf32>
    %c0_15 = arith.constant 0 : index
    %c0_16 = arith.constant 0 : index
    %19 = vector.load %arg8[%c0_15, %c0_16] : memref<32x128xf32, #tpu.memory_space<vmem>>, vector<32x128xf32>
    tpu.vector_store %arg8[%c0_15, %c0_16], %18 {strides = array<i32>} : memref<32x128xf32, #tpu.memory_space<vmem>>, vector<32x128xf32>,
    %c32_i32 = arith.constant 32 : i32
    %20 = arith.muli %arg0, %c32_i32 : i32
    %21 = tpu.iota {dimensions = array<i32: 0>} : vector<32x1xi32>
    %22 = vector.broadcast %20 : i32 to vector<32x1xi32>
    %23 = arith.addi %22, %21 : vector<32x1xi32>
    %c0_17 = arith.constant 0 : index
    %24 = memref.load %arg1[%c0_17] : memref<1xi32, #tpu.memory_space<smem>>
    %25 = vector.broadcast %24 : i32 to vector<32x1xi32>
    %26 = arith.cmpi slt, %23, %25 : vector<32x1xi32>
    %cst_18 = arith.constant 0.000000e+00 : f32
    %27 = vector.shape_cast %26 : vector<32x1xi1> to vector<32x1xi1>
    %28 = vector.broadcast %27 : vector<32x1xi1> to vector<32x128xi1>
    %29 = vector.broadcast %cst_18 : f32 to vector<32x128xf32>
    %30 = arith.select %28, %18, %29 : vector<32x128xi1>, vector<32x128xf32>
    %cst_19 = arith.constant dense<0.000000e+00> : vector<128xf32>
    %31 = vector.multi_reduction <add>, %30, %cst_19 [0] : vector<32x128xf32> to vector<128xf32>
    %32 = vector.shape_cast %31 : vector<128xf32> to vector<1x128xf32>
    %33 = arith.mulf %30, %30 : vector<32x128xf32>
    %cst_20 = arith.constant dense<0.000000e+00> : vector<128xf32>
    %34 = vector.multi_reduction <add>, %33, %cst_20 [0] : vector<32x128xf32> to vector<128xf32>
    %35 = vector.shape_cast %34 : vector<128xf32> to vector<1x128xf32>
    %36 = tpu.concatenate %32, %35 in 0 : vector<1x128xf32>, vector<1x128xf32> -> vector<2x128xf32>
    %37 = vector.shape_cast %36 : vector<2x128xf32> to vector<1x2x128xf32>
    %c0_21 = arith.constant 0 : index
    %c0_22 = arith.constant 0 : index
    %c0_23 = arith.constant 0 : index
    %38 = vector.load %arg9[%c0_21, %c0_22, %c0_23] : memref<1x2x128xf32, #tpu.memory_space<vmem>>, vector<1x2x128xf32>
    tpu.vector_store %arg9[%c0_21, %c0_22, %c0_23], %37 {strides = array<i32>} : memref<1x2x128xf32, #tpu.memory_space<vmem>>, vector<1x2x128xf32>,
    return
  }
  func.func @transform_0(%arg0: i32, %arg1: memref<1xi32, #tpu.memory_space<smem>>) -> (i32, i32) {
    %c0_i32 = arith.constant 0 : i32
    %c0_i32_0 = arith.constant 0 : i32
    return %arg0, %c0_i32 : i32, i32
  }
  func.func @transform_1(%arg0: i32, %arg1: memref<1xi32, #tpu.memory_space<smem>>) -> (i32, i32) {
    %c0_i32 = arith.constant 0 : i32
    %c0_i32_0 = arith.constant 0 : i32
    %c0_i32_1 = arith.constant 0 : i32
    return %c0_i32, %c0_i32_0 : i32, i32
  }
  func.func @transform_2(%arg0: i32, %arg1: memref<1xi32, #tpu.memory_space<smem>>) -> (i32, i32) {
    %c0_i32 = arith.constant 0 : i32
    %c0_i32_0 = arith.constant 0 : i32
    %c0_i32_1 = arith.constant 0 : i32
    return %c0_i32, %c0_i32_0 : i32, i32
  }
  func.func @transform_3(%arg0: i32, %arg1: memref<1xi32, #tpu.memory_space<smem>>) -> (i32, i32) {
    %c0_i32 = arith.constant 0 : i32
    %c0_i32_0 = arith.constant 0 : i32
    %c0_i32_1 = arith.constant 0 : i32
    return %c0_i32, %c0_i32_0 : i32, i32
  }
  func.func @transform_4(%arg0: i32, %arg1: memref<1xi32, #tpu.memory_space<smem>>) -> (i32, i32) {
    %c0_i32 = arith.constant 0 : i32
    %c0_i32_0 = arith.constant 0 : i32
    %c0_i32_1 = arith.constant 0 : i32
    return %c0_i32, %c0_i32_0 : i32, i32
  }
  func.func @transform_5(%arg0: i32, %arg1: memref<1xi32, #tpu.memory_space<smem>>) -> (i32, i32) {
    %c0_i32 = arith.constant 0 : i32
    %c0_i32_0 = arith.constant 0 : i32
    %c0_i32_1 = arith.constant 0 : i32
    return %c0_i32, %c0_i32_0 : i32, i32
  }
  func.func @transform_6(%arg0: i32, %arg1: memref<1xi32, #tpu.memory_space<smem>>) -> (i32, i32) {
    %c0_i32 = arith.constant 0 : i32
    %c0_i32_0 = arith.constant 0 : i32
    return %arg0, %c0_i32 : i32, i32
  }
  func.func @transform_7(%arg0: i32, %arg1: memref<1xi32, #tpu.memory_space<smem>>) -> (i32, i32, i32) {
    %c0_i32 = arith.constant 0 : i32
    %c0_i32_0 = arith.constant 0 : i32
    %c0_i32_1 = arith.constant 0 : i32
    return %arg0, %c0_i32, %c0_i32_0 : i32, i32, i32
  }
}

</mosaic_0001>

<llo_original>
// kernel: gin_node_weight_encoder.7
$region0: #{gin_node_weight_encoder.7}
  #allocation0 [shape = 'u32[]', space=smem, size = 0x4, offset = 0x4, fixed_abs, tag = 'smem constant byte address 0x4 - core index']
  #allocation1 [shape = 'u32[144,128]{1,0:T(1,128)}', space=vmem, size = 0x12000, scoped, tag = 'internal scratch']
  #allocation2 [shape = 's32[1]{0}', space=sflag, size = 0x4, scoped, tag = 'scoped memory for gin_node_weight_encoder.7']
  #allocation3 [shape = 's32[1]{0:T(128)S(6)}', space=smem, size = 0x200, scoped, tag = 'prefetched SMEM operand 0']
  %s0 = inlined_call_operand.<no memory space> [shape: s32[1], index: 0, kind: input, shape index: {}]
  %s1 = inlined_call_operand.vmem [shape: f32[32,128], index: 1, kind: input, shape index: {}]
  %s2 = inlined_call_operand.vmem [shape: f32[1,2,128], index: 2, kind: input, shape index: {}]
  %s3 = inlined_call_operand.vmem [shape: f32[1,128], index: 3, kind: input, shape index: {}]
  %s4 = inlined_call_operand.vmem [shape: f32[1,128], index: 4, kind: input, shape index: {}]
  %s5 = inlined_call_operand.vmem [shape: f32[32,128], index: 5, kind: output, shape index: {}]
  %s6 = sld [smem:[#allocation0]]
  $region26: #{gin_node_weight_encoder.7} parent=0
    _
  %s8 = ssub.s32 1, %s6
  %s9 = scalar_select 0, %s8, %s6
  %10 = sst [smem:[#allocation3]] %s0
  // Predicated region
  $region2: #{gin_node_weight_encoder.7} parent=0 // pred_check
    _
  $region3: #{gin_node_weight_encoder.7} parent=0 // pred_check_branch
    %12 = sbr.rel (0) target = $region5
  $region4: #{gin_node_weight_encoder.7} parent=0 // pred_region
    _
  $region5: #{gin_node_weight_encoder.7} parent=0 // pred_fallthru
    _
  // Predicated region
  $region6: #{gin_node_weight_encoder.7} parent=0 // pred_check
    _
  $region7: #{gin_node_weight_encoder.7} parent=0 // pred_check_branch
    %14 = sbr.rel (0) target = $region9
  $region8: #{gin_node_weight_encoder.7} parent=0 // pred_region
    _
  $region9: #{gin_node_weight_encoder.7} parent=0 // pred_fallthru
    _
  // Predicated region
  $region10: #{gin_node_weight_encoder.7} parent=0 // pred_check
    _
  $region11: #{gin_node_weight_encoder.7} parent=0 // pred_check_branch
    %16 = sbr.rel (0) target = $region13
  $region12: #{gin_node_weight_encoder.7} parent=0 // pred_region
    _
  $region13: #{gin_node_weight_encoder.7} parent=0 // pred_fallthru
    _
  // Predicated region
  $region14: #{gin_node_weight_encoder.7} parent=0 // pred_check
    _
  $region15: #{gin_node_weight_encoder.7} parent=0 // pred_check_branch
    %18 = sbr.rel (0) target = $region17
  $region16: #{gin_node_weight_encoder.7} parent=0 // pred_region
    _
  $region17: #{gin_node_weight_encoder.7} parent=0 // pred_fallthru
    _
  %s19 = sld [smem:[#allocation3]]
  %s20 = scvt.s32.f32 %s19
  %v21 = vstv %s20
  %v22 = vrcp.pop %v21
  %s23 = vtos %v22
  %v24 = vld [vmem:[%s2] sm:$0x3]
  %v25 = vadd.f32 %v24, 0.0
  %v26 = vstv %s23
  %v27 = vmul.f32 %v25, %v26
  %v28 = vmul.f32 %v27, %v27
  %v30 = vrot.slane %v28, 7
  %v32 = vsub.f32 %v27, %v30
  %v33 = vmax.f32 %v32, 0.0
  %v34 = vld [vmem:[%s3] sm:$0x1]
  %v35 = vadd.f32 %v33, 1e-05
  %v36 = vrsqrt.pop %v35
  %v39 = vunpack.c.l.s4 1966171168
  %v40 = vunpack.c.0.s8 %v39
  %v41 = vlaneseq
  %v42 = vshrl.u32 %v41, 7
  %v43 = vsub.s32 %v40, %v42
  %v44 = vrot.slane %v36, %v43
  %v45 = vcombine.high %v44, %v44
  %v47 = vunpack.c.l.s4 1966171168
  %v48 = vunpack.c.0.s8 %v47
  %v49 = vlaneseq
  %v50 = vshrl.u32 %v49, 7
  %v51 = vsub.s32 %v48, %v50
  %v52 = vrot.slane %v45, %v51
  %v54 = vmul.f32 %v34, %v52
  %v55 = vld [vmem:[%s4] sm:$0x1]
  %v56 = vmul.f32 %v27, %v54
  %v57 = vsub.f32 %v55, %v56
  %v58 = vld [vmem:[%s1] sm:$0xff]
  %v59 = vld [vmem:[%s1 + $0x8] sm:$0xff]
  %v60 = vld [vmem:[%s1 + $0x10] sm:$0xff]
  %v61 = vld [vmem:[%s1 + $0x18] sm:$0xff]
  %v63 = vlaneseq
  %v64 = vshrl.u32 %v63, 7
  %v65 = vsub.s32 0, %v64
  %v66 = vrot.slane %v54, %v65
  %v68 = vmul.f32 %v58, %v66
  %v69 = vmul.f32 %v59, %v66
  %v70 = vmul.f32 %v60, %v66
  %v71 = vmul.f32 %v61, %v66
  %v73 = vlaneseq
  %v74 = vshrl.u32 %v73, 7
  %v75 = vsub.s32 0, %v74
  %v76 = vrot.slane %v57, %v75
  %v78 = vadd.f32 %v68, %v76
  %v79 = vadd.f32 %v69, %v76
  %v80 = vadd.f32 %v70, %v76
  %v81 = vadd.f32 %v71, %v76
  %82 = vst [vmem:[%s5] sm:$0xff] %v78
  %83 = vst [vmem:[%s5 + $0x8] sm:$0xff] %v79
  %84 = vst [vmem:[%s5 + $0x10] sm:$0xff] %v80
  %85 = vst [vmem:[%s5 + $0x18] sm:$0xff] %v81
  // Predicated region
  $region18: #{gin_node_weight_encoder.7} parent=0 // pred_check
    _
  $region19: #{gin_node_weight_encoder.7} parent=0 // pred_check_branch
    %87 = sbr.rel (0) target = $region21
  $region20: #{gin_node_weight_encoder.7} parent=0 // pred_region
    _
  $region21: #{gin_node_weight_encoder.7} parent=0 // pred_fallthru
    _
  // Predicated region
  $region22: #{gin_node_weight_encoder.7} parent=0 // pred_check
    _
  $region23: #{gin_node_weight_encoder.7} parent=0 // pred_check_branch
    %89 = sbr.rel (0) target = $region25
  $region24: #{gin_node_weight_encoder.7} parent=0 // pred_region
    _
  $region25: #{gin_node_weight_encoder.7} parent=0 // pred_fallthru
    _

// kernel: gin_node_weight_encoder.5
$region0: #{gin_node_weight_encoder.5}
  #allocation0 [shape = 'u32[]', space=smem, size = 0x4, offset = 0x4, fixed_abs, tag = 'smem constant byte address 0x4 - core index']
  #allocation1 [shape = 'u32[144,128]{1,0:T(1,128)}', space=vmem, size = 0x12000, scoped, tag = 'internal scratch']
  #allocation2 [shape = 's32[1]{0}', space=sflag, size = 0x4, scoped, tag = 'scoped memory for gin_node_weight_encoder.5']
  #allocation3 [shape = 's32[1]{0:T(128)S(6)}', space=smem, size = 0x200, scoped, tag = 'prefetched SMEM operand 0']
  %s0 = inlined_call_operand.<no memory space> [shape: s32[1], index: 0, kind: input, shape index: {}]
  %s1 = inlined_call_operand.vmem [shape: f32[32,128], index: 1, kind: input, shape index: {}]
  %s2 = inlined_call_operand.vmem [shape: f32[1,2,128], index: 2, kind: input, shape index: {}]
  %s3 = inlined_call_operand.vmem [shape: f32[1,128], index: 3, kind: input, shape index: {}]
  %s4 = inlined_call_operand.vmem [shape: f32[1,128], index: 4, kind: input, shape index: {}]
  %s5 = inlined_call_operand.vmem [shape: bf16[32,128], index: 5, kind: output, shape index: {}]
  %s6 = sld [smem:[#allocation0]]
  $region26: #{gin_node_weight_encoder.5} parent=0
    _
  %s8 = ssub.s32 1, %s6
  %s9 = scalar_select 0, %s8, %s6
  %10 = sst [smem:[#allocation3]] %s0
  // Predicated region
  $region2: #{gin_node_weight_encoder.5} parent=0 // pred_check
    _
  $region3: #{gin_node_weight_encoder.5} parent=0 // pred_check_branch
    %12 = sbr.rel (0) target = $region5
  $region4: #{gin_node_weight_encoder.5} parent=0 // pred_region
    _
  $region5: #{gin_node_weight_encoder.5} parent=0 // pred_fallthru
    _
  // Predicated region
  $region6: #{gin_node_weight_encoder.5} parent=0 // pred_check
    _
  $region7: #{gin_node_weight_encoder.5} parent=0 // pred_check_branch
    %14 = sbr.rel (0) target = $region9
  $region8: #{gin_node_weight_encoder.5} parent=0 // pred_region
    _
  $region9: #{gin_node_weight_encoder.5} parent=0 // pred_fallthru
    _
  // Predicated region
  $region10: #{gin_node_weight_encoder.5} parent=0 // pred_check
    _
  $region11: #{gin_node_weight_encoder.5} parent=0 // pred_check_branch
    %16 = sbr.rel (0) target = $region13
  $region12: #{gin_node_weight_encoder.5} parent=0 // pred_region
    _
  $region13: #{gin_node_weight_encoder.5} parent=0 // pred_fallthru
    _
  // Predicated region
  $region14: #{gin_node_weight_encoder.5} parent=0 // pred_check
    _
  $region15: #{gin_node_weight_encoder.5} parent=0 // pred_check_branch
    %18 = sbr.rel (0) target = $region17
  $region16: #{gin_node_weight_encoder.5} parent=0 // pred_region
    _
  $region17: #{gin_node_weight_encoder.5} parent=0 // pred_fallthru
    _
  %s19 = sld [smem:[#allocation3]]
  %s20 = scvt.s32.f32 %s19
  %v21 = vstv %s20
  %v22 = vrcp.pop %v21
  %s23 = vtos %v22
  %v24 = vld [vmem:[%s2] sm:$0x3]
  %v25 = vadd.f32 %v24, 0.0
  %v26 = vstv %s23
  %v27 = vmul.f32 %v25, %v26
  %v28 = vmul.f32 %v27, %v27
  %v30 = vrot.slane %v28, 7
  %v32 = vsub.f32 %v27, %v30
  %v33 = vmax.f32 %v32, 0.0
  %v34 = vld [vmem:[%s3] sm:$0x1]
  %v35 = vadd.f32 %v33, 1e-05
  %v36 = vrsqrt.pop %v35
  %v39 = vunpack.c.l.s4 1966171168
  %v40 = vunpack.c.0.s8 %v39
  %v41 = vlaneseq
  %v42 = vshrl.u32 %v41, 7
  %v43 = vsub.s32 %v40, %v42
  %v44 = vrot.slane %v36, %v43
  %v45 = vcombine.high %v44, %v44
  %v47 = vunpack.c.l.s4 1966171168
  %v48 = vunpack.c.0.s8 %v47
  %v49 = vlaneseq
  %v50 = vshrl.u32 %v49, 7
  %v51 = vsub.s32 %v48, %v50
  %v52 = vrot.slane %v45, %v51
  %v54 = vmul.f32 %v34, %v52
  %v55 = vld [vmem:[%s4] sm:$0x1]
  %v56 = vmul.f32 %v27, %v54
  %v57 = vsub.f32 %v55, %v56
  %v58 = vld [vmem:[%s1] sm:$0xff]
  %v59 = vld [vmem:[%s1 + $0x8] sm:$0xff]
  %v60 = vld [vmem:[%s1 + $0x10] sm:$0xff]
  %v61 = vld [vmem:[%s1 + $0x18] sm:$0xff]
  %v63 = vlaneseq
  %v64 = vshrl.u32 %v63, 7
  %v65 = vsub.s32 0, %v64
  %v66 = vrot.slane %v54, %v65
  %v68 = vmul.f32 %v58, %v66
  %v69 = vmul.f32 %v59, %v66
  %v70 = vmul.f32 %v60, %v66
  %v71 = vmul.f32 %v61, %v66
  %v73 = vlaneseq
  %v74 = vshrl.u32 %v73, 7
  %v75 = vsub.s32 0, %v74
  %v76 = vrot.slane %v57, %v75
  %v78 = vadd.f32 %v68, %v76
  %v79 = vadd.f32 %v69, %v76
  %v80 = vadd.f32 %v70, %v76
  %v81 = vadd.f32 %v71, %v76
  %v82 = vpack.c.bf16 %v79, %v78
  %v83 = vpack.c.bf16 %v81, %v80
  %v86 = vunpack.c.l.b16 %v82
  %v87 = vunpack.c.h.b16 %v82
  %v88 = vunpack.c.l.b16 %v83
  %v89 = vunpack.c.h.b16 %v83
  %v90 = vpack.c.b16 %v86, %v86
  %v91 = vpack.c.b16 %v87, %v87
  %v92 = vpack.c.b16 %v88, %v88
  %v93 = vpack.c.b16 %v89, %v89
  %98 = vst [vmem:[%s5] sm:$0xf] %v90
  %99 = vst [vmem:[%s5 + $0x4] sm:$0xf] %v91
  %100 = vst [vmem:[%s5 + $0x8] sm:$0xf] %v92
  %101 = vst [vmem:[%s5 + $0xc] sm:$0xf] %v93
  // Predicated region
  $region18: #{gin_node_weight_encoder.5} parent=0 // pred_check
    _
  $region19: #{gin_node_weight_encoder.5} parent=0 // pred_check_branch
    %103 = sbr.rel (0) target = $region21
  $region20: #{gin_node_weight_encoder.5} parent=0 // pred_region
    _
  $region21: #{gin_node_weight_encoder.5} parent=0 // pred_fallthru
    _
  // Predicated region
  $region22: #{gin_node_weight_encoder.5} parent=0 // pred_check
    _
  $region23: #{gin_node_weight_encoder.5} parent=0 // pred_check_branch
    %105 = sbr.rel (0) target = $region25
  $region24: #{gin_node_weight_encoder.5} parent=0 // pred_region
    _
  $region25: #{gin_node_weight_encoder.5} parent=0 // pred_fallthru
    _

// kernel: gin_node_weight_encoder.4
$region0: #{gin_node_weight_encoder.4}
  #allocation0 [shape = 'u32[]', space=smem, size = 0x4, offset = 0x4, fixed_abs, tag = 'smem constant byte address 0x4 - core index']
  #allocation1 [shape = 'u32[144,128]{1,0:T(1,128)}', space=vmem, size = 0x12000, scoped, tag = 'internal scratch']
  #allocation2 [shape = 's32[1]{0}', space=sflag, size = 0x4, scoped, tag = 'scoped memory for gin_node_weight_encoder.4']
  #allocation3 [shape = 's32[1]{0:T(128)S(6)}', space=smem, size = 0x200, scoped, tag = 'prefetched SMEM operand 0']
  %s0 = inlined_call_operand.<no memory space> [shape: s32[1], index: 0, kind: input, shape index: {}]
  %s1 = inlined_call_operand.vmem [shape: bf16[32,32], index: 1, kind: input, shape index: {}]
  %s2 = inlined_call_operand.vmem [shape: bf16[32,128], index: 2, kind: input, shape index: {}]
  %s3 = inlined_call_operand.vmem [shape: bf16[128,128], index: 3, kind: input, shape index: {}]
  %s4 = inlined_call_operand.vmem [shape: f32[1,128], index: 4, kind: input, shape index: {}]
  %s5 = inlined_call_operand.vmem [shape: bf16[128,128], index: 5, kind: input, shape index: {}]
  %s6 = inlined_call_operand.vmem [shape: f32[1,128], index: 6, kind: input, shape index: {}]
  %s7 = inlined_call_operand.vmem [shape: f32[32,128], index: 7, kind: output, shape index: {0}]
  %s8 = inlined_call_operand.vmem [shape: f32[1,2,128], index: 8, kind: output, shape index: {1}]
  %9 = xla_tuple %s7, %s8
  %s10 = sld [smem:[#allocation0]]
  $region42: #{gin_node_weight_encoder.4} parent=0
    _
  %s12 = ssub.s32 1, %s10
  %s13 = scalar_select 0, %s12, %s10
  %14 = sst [smem:[#allocation3]] %s0
  // Predicated region
  $region2: #{gin_node_weight_encoder.4} parent=0 // pred_check
    _
  $region3: #{gin_node_weight_encoder.4} parent=0 // pred_check_branch
    %16 = sbr.rel (0) target = $region5
  $region4: #{gin_node_weight_encoder.4} parent=0 // pred_region
    _
  $region5: #{gin_node_weight_encoder.4} parent=0 // pred_fallthru
    _
  // Predicated region
  $region6: #{gin_node_weight_encoder.4} parent=0 // pred_check
    _
  $region7: #{gin_node_weight_encoder.4} parent=0 // pred_check_branch
    %18 = sbr.rel (0) target = $region9
  $region8: #{gin_node_weight_encoder.4} parent=0 // pred_region
    _
  $region9: #{gin_node_weight_encoder.4} parent=0 // pred_fallthru
    _
  // Predicated region
  $region10: #{gin_node_weight_encoder.4} parent=0 // pred_check
    _
  $region11: #{gin_node_weight_encoder.4} parent=0 // pred_check_branch
    %20 = sbr.rel (0) target = $region13
  $region12: #{gin_node_weight_encoder.4} parent=0 // pred_region
    _
  $region13: #{gin_node_weight_encoder.4} parent=0 // pred_fallthru
    _
  // Predicated region
  $region14: #{gin_node_weight_encoder.4} parent=0 // pred_check
    _
  $region15: #{gin_node_weight_encoder.4} parent=0 // pred_check_branch
    %22 = sbr.rel (0) target = $region17
  $region16: #{gin_node_weight_encoder.4} parent=0 // pred_region
    _
  $region17: #{gin_node_weight_encoder.4} parent=0 // pred_fallthru
    _
  // Predicated region
  $region18: #{gin_node_weight_encoder.4} parent=0 // pred_check
    _
  $region19: #{gin_node_weight_encoder.4} parent=0 // pred_check_branch
    %24 = sbr.rel (0) target = $region21
  $region20: #{gin_node_weight_encoder.4} parent=0 // pred_region
    _
  $region21: #{gin_node_weight_encoder.4} parent=0 // pred_fallthru
    _
  // Predicated region
  $region22: #{gin_node_weight_encoder.4} parent=0 // pred_check
    _
  $region23: #{gin_node_weight_encoder.4} parent=0 // pred_check_branch
    %26 = sbr.rel (0) target = $region25
  $region24: #{gin_node_weight_encoder.4} parent=0 // pred_region
    _
  $region25: #{gin_node_weight_encoder.4} parent=0 // pred_fallthru
    _
  %v28 = vld [vmem:[%s1] sm:$0xf]
  %v29 = vld [vmem:[%s1 + $0x4] sm:$0xf]
  %v30 = vld [vmem:[%s1 + $0x8] sm:$0xf]
  %v31 = vld [vmem:[%s1 + $0xc] sm:$0xf]
  %v32 = vld [vmem:[%s2] sm:$0xf]
  %v33 = vld [vmem:[%s2 + $0x4] sm:$0xf]
  %v34 = vld [vmem:[%s2 + $0x8] sm:$0xf]
  %v35 = vld [vmem:[%s2 + $0xc] sm:$0xf]
  %v40 = vunpack.c.l.b16 %v28
  %v41 = vunpack.c.l.b16 %v29
  %v42 = vunpack.c.l.b16 %v30
  %v43 = vunpack.c.l.b16 %v31
  %v44 = vpack.c.b16 %v41, %v40
  %v45 = vpack.c.b16 %v43, %v42
  %v50 = vunpack.c.l.b16 %v32
  %v51 = vunpack.c.l.b16 %v33
  %v52 = vunpack.c.l.b16 %v34
  %v53 = vunpack.c.l.b16 %v35
  %v54 = vpack.c.b16 %v51, %v50
  %v55 = vpack.c.b16 %v53, %v52
  %vm58 = vcmask 261120
  %v60 = vsel %vm58, %v44, 0
  %v63 = vsel %vm58, %v45, 0
  %65 = vmatprep.subr.bf16.mxu0 0
  %66 = vmatpush1.bf16.msra.mxu0 %v54
  %67 = vmatprep.subr.bf16.mxu0 0
  %68 = vmatpush1.bf16.msra.mxu0 %v55
  %69 = vmatprep.subr.bf16.mxu0 0
  %70 = vmatpush1.bf16.msra.mxu0 0
  %71 = vmatprep.subr.bf16.mxu0 0
  %72 = vmatpush1.bf16.msra.mxu0 0
  %73 = vmatprep.subr.bf16.mxu0 0
  %74 = vmatpush1.bf16.msra.mxu0 0
  %75 = vmatprep.subr.bf16.mxu0 0
  %76 = vmatpush1.bf16.msra.mxu0 0
  %77 = vmatprep.subr.bf16.mxu0 0
  %78 = vmatpush1.bf16.msra.mxu0 0
  %79 = vmatprep.subr.bf16.mxu0 0
  %80 = vmatpush1.bf16.msra.mxu0 0
  %81 = vmatprep.subr.bf16.mxu0 0
  %82 = vmatpush1.bf16.msra.mxu0 0
  %83 = vmatprep.subr.bf16.mxu0 0
  %84 = vmatpush1.bf16.msra.mxu0 0
  %85 = vmatprep.subr.bf16.mxu0 0
  %86 = vmatpush1.bf16.msra.mxu0 0
  %87 = vmatprep.subr.bf16.mxu0 0
  %88 = vmatpush1.bf16.msra.mxu0 0
  %89 = vmatprep.subr.bf16.mxu0 0
  %90 = vmatpush1.bf16.msra.mxu0 0
  %91 = vmatprep.subr.bf16.mxu0 0
  %92 = vmatpush1.bf16.msra.mxu0 0
  %93 = vmatprep.subr.bf16.mxu0 0
  %94 = vmatpush1.bf16.msra.mxu0 0
  %95 = vmatprep.subr.bf16.mxu0 0
  %96 = vmatpush1.bf16.msra.mxu0 0
  %97 = vmatprep.mubr.bf16.mxu0 0
  %98 = vmatmul.mubr.bf16.gmra.mrb[0].mxu0 %v60
  %v99 = vpop.f32.mrb[0].mxu0
  %v100 = vadd.f32 0.0, %v99
  %v101 = vpop.f32.mrb[0].mxu0
  %v102 = vpop.f32.mrb[0].mxu0
  %v103 = vadd.f32 0.0, %v102
  %v104 = vpop.f32.mrb[0].mxu0
  %105 = vmatprep.mubr.bf16.mxu0 0
  %106 = vmatmul.mubr.bf16.gmra.mrb[0].mxu0 %v63
  %v107 = vpop.f32.mrb[0].mxu0
  %v108 = vadd.f32 0.0, %v107
  %v109 = vpop.f32.mrb[0].mxu0
  %v110 = vpop.f32.mrb[0].mxu0
  %v111 = vadd.f32 0.0, %v110
  %v112 = vpop.f32.mrb[0].mxu0
  %113 = vdwg.mxu0
  %v114 = vpack.c.bf16 %v103, %v100
  %v115 = vpack.c.bf16 %v111, %v108
  %v116 = vld [vmem:[%s3] sm:$0xf]
  %v117 = vld [vmem:[%s3 + $0x4] sm:$0xf]
  %v118 = vld [vmem:[%s3 + $0x8] sm:$0xf]
  %v119 = vld [vmem:[%s3 + $0xc] sm:$0xf]
  %v120 = vld [vmem:[%s3 + $0x10] sm:$0xf]
  %v121 = vld [vmem:[%s3 + $0x14] sm:$0xf]
  %v122 = vld [vmem:[%s3 + $0x18] sm:$0xf]
  %v123 = vld [vmem:[%s3 + $0x1c] sm:$0xf]
  %v124 = vld [vmem:[%s3 + $0x20] sm:$0xf]
  %v125 = vld [vmem:[%s3 + $0x24] sm:$0xf]
  %v126 = vld [vmem:[%s3 + $0x28] sm:$0xf]
  %v127 = vld [vmem:[%s3 + $0x2c] sm:$0xf]
  %v128 = vld [vmem:[%s3 + $0x30] sm:$0xf]
  %v129 = vld [vmem:[%s3 + $0x34] sm:$0xf]
  %v130 = vld [vmem:[%s3 + $0x38] sm:$0xf]
  %v131 = vld [vmem:[%s3 + $0x3c] sm:$0xf]
  %v132 = vld [vmem:[%s4] sm:$0x1]
  %v134 = vlaneseq
  %v135 = vshrl.u32 %v134, 7
  %v136 = vsub.s32 0, %v135
  %v137 = vrot.slane %v132, %v136
  %v155 = vunpack.c.l.b16 %v116
  %v156 = vunpack.c.l.b16 %v117
  %v157 = vunpack.c.l.b16 %v118
  %v158 = vunpack.c.l.b16 %v119
  %v159 = vunpack.c.l.b16 %v120
  %v160 = vunpack.c.l.b16 %v121
  %v161 = vunpack.c.l.b16 %v122
  %v162 = vunpack.c.l.b16 %v123
  %v163 = vunpack.c.l.b16 %v124
  %v164 = vunpack.c.l.b16 %v125
  %v165 = vunpack.c.l.b16 %v126
  %v166 = vunpack.c.l.b16 %v127
  %v167 = vunpack.c.l.b16 %v128
  %v168 = vunpack.c.l.b16 %v129
  %v169 = vunpack.c.l.b16 %v130
  %v170 = vunpack.c.l.b16 %v131
  %v171 = vpack.c.b16 %v156, %v155
  %v172 = vpack.c.b16 %v158, %v157
  %v173 = vpack.c.b16 %v160, %v159
  %v174 = vpack.c.b16 %v162, %v161
  %v175 = vpack.c.b16 %v164, %v163
  %v176 = vpack.c.b16 %v166, %v165
  %v177 = vpack.c.b16 %v168, %v167
  %v178 = vpack.c.b16 %v170, %v169
  %187 = vmatprep.subr.bf16.mxu0 0
  %188 = vmatpush1.bf16.msra.mxu0 %v171
  %189 = vmatprep.subr.bf16.mxu0 0
  %190 = vmatpush1.bf16.msra.mxu0 %v172
  %191 = vmatprep.subr.bf16.mxu0 0
  %192 = vmatpush1.bf16.msra.mxu0 %v173
  %193 = vmatprep.subr.bf16.mxu0 0
  %194 = vmatpush1.bf16.msra.mxu0 %v174
  %195 = vmatprep.subr.bf16.mxu0 0
  %196 = vmatpush1.bf16.msra.mxu0 %v175
  %197 = vmatprep.subr.bf16.mxu0 0
  %198 = vmatpush1.bf16.msra.mxu0 %v176
  %199 = vmatprep.subr.bf16.mxu0 0
  %200 = vmatpush1.bf16.msra.mxu0 %v177
  %201 = vmatprep.subr.bf16.mxu0 0
  %202 = vmatpush1.bf16.msra.mxu0 %v178
  %203 = vmatprep.subr.bf16.mxu0 0
  %204 = vmatpush1.bf16.msra.mxu0 0
  %205 = vmatprep.subr.bf16.mxu0 0
  %206 = vmatpush1.bf16.msra.mxu0 0
  %207 = vmatprep.subr.bf16.mxu0 0
  %208 = vmatpush1.bf16.msra.mxu0 0
  %209 = vmatprep.subr.bf16.mxu0 0
  %210 = vmatpush1.bf16.msra.mxu0 0
  %211 = vmatprep.subr.bf16.mxu0 0
  %212 = vmatpush1.bf16.msra.mxu0 0
  %213 = vmatprep.subr.bf16.mxu0 0
  %214 = vmatpush1.bf16.msra.mxu0 0
  %215 = vmatprep.subr.bf16.mxu0 0
  %216 = vmatpush1.bf16.msra.mxu0 0
  %217 = vmatprep.subr.bf16.mxu0 0
  %218 = vmatpush1.bf16.msra.mxu0 0
  %219 = vmatprep.mubr.bf16.mxu0 0
  %220 = vmatmul.mubr.bf16.gmra.mrb[0].mxu0 %v114
  %v221 = vpop.f32.mrb[0].mxu0
  %v222 = vadd.f32 %v137, %v221
  %v223 = vpop.f32.mrb[0].mxu0
  %v224 = vpop.f32.mrb[0].mxu0
  %v225 = vadd.f32 %v137, %v224
  %v226 = vpop.f32.mrb[0].mxu0
  %227 = vmatprep.mubr.bf16.mxu0 0
  %228 = vmatmul.mubr.bf16.gmra.mrb[0].mxu0 %v115
  %v229 = vpop.f32.mrb[0].mxu0
  %v230 = vadd.f32 %v137, %v229
  %v231 = vpop.f32.mrb[0].mxu0
  %v232 = vpop.f32.mrb[0].mxu0
  %v233 = vadd.f32 %v137, %v232
  %v234 = vpop.f32.mrb[0].mxu0
  %235 = vdwg.mxu0
  %v236 = vmax.f32 %v222, 0.0
  %v237 = vmax.f32 %v225, 0.0
  %v238 = vmax.f32 %v230, 0.0
  %v239 = vmax.f32 %v233, 0.0
  %v240 = vpack.c.bf16 %v237, %v236
  %v241 = vpack.c.bf16 %v239, %v238
  %v242 = vld [vmem:[%s5] sm:$0xf]
  %v243 = vld [vmem:[%s5 + $0x4] sm:$0xf]
  %v244 = vld [vmem:[%s5 + $0x8] sm:$0xf]
  %v245 = vld [vmem:[%s5 + $0xc] sm:$0xf]
  %v246 = vld [vmem:[%s5 + $0x10] sm:$0xf]
  %v247 = vld [vmem:[%s5 + $0x14] sm:$0xf]
  %v248 = vld [vmem:[%s5 + $0x18] sm:$0xf]
  %v249 = vld [vmem:[%s5 + $0x1c] sm:$0xf]
  %v250 = vld [vmem:[%s5 + $0x20] sm:$0xf]
  %v251 = vld [vmem:[%s5 + $0x24] sm:$0xf]
  %v252 = vld [vmem:[%s5 + $0x28] sm:$0xf]
  %v253 = vld [vmem:[%s5 + $0x2c] sm:$0xf]
  %v254 = vld [vmem:[%s5 + $0x30] sm:$0xf]
  %v255 = vld [vmem:[%s5 + $0x34] sm:$0xf]
  %v256 = vld [vmem:[%s5 + $0x38] sm:$0xf]
  %v257 = vld [vmem:[%s5 + $0x3c] sm:$0xf]
  %v258 = vld [vmem:[%s6] sm:$0x1]
  %v260 = vlaneseq
  %v261 = vshrl.u32 %v260, 7
  %v262 = vsub.s32 0, %v261
  %v263 = vrot.slane %v258, %v262
  %v281 = vunpack.c.l.b16 %v242
  %v282 = vunpack.c.l.b16 %v243
  %v283 = vunpack.c.l.b16 %v244
  %v284 = vunpack.c.l.b16 %v245
  %v285 = vunpack.c.l.b16 %v246
  %v286 = vunpack.c.l.b16 %v247
  %v287 = vunpack.c.l.b16 %v248
  %v288 = vunpack.c.l.b16 %v249
  %v289 = vunpack.c.l.b16 %v250
  %v290 = vunpack.c.l.b16 %v251
  %v291 = vunpack.c.l.b16 %v252
  %v292 = vunpack.c.l.b16 %v253
  %v293 = vunpack.c.l.b16 %v254
  %v294 = vunpack.c.l.b16 %v255
  %v295 = vunpack.c.l.b16 %v256
  %v296 = vunpack.c.l.b16 %v257
  %v297 = vpack.c.b16 %v282, %v281
  %v298 = vpack.c.b16 %v284, %v283
  %v299 = vpack.c.b16 %v286, %v285
  %v300 = vpack.c.b16 %v288, %v287
  %v301 = vpack.c.b16 %v290, %v289
  %v302 = vpack.c.b16 %v292, %v291
  %v303 = vpack.c.b16 %v294, %v293
  %v304 = vpack.c.b16 %v296, %v295
  %313 = vmatprep.subr.bf16.mxu0 0
  %314 = vmatpush1.bf16.msra.mxu0 %v297
  %315 = vmatprep.subr.bf16.mxu0 0
  %316 = vmatpush1.bf16.msra.mxu0 %v298
  %317 = vmatprep.subr.bf16.mxu0 0
  %318 = vmatpush1.bf16.msra.mxu0 %v299
  %319 = vmatprep.subr.bf16.mxu0 0
  %320 = vmatpush1.bf16.msra.mxu0 %v300
  %321 = vmatprep.subr.bf16.mxu0 0
  %322 = vmatpush1.bf16.msra.mxu0 %v301
  %323 = vmatprep.subr.bf16.mxu0 0
  %324 = vmatpush1.bf16.msra.mxu0 %v302
  %325 = vmatprep.subr.bf16.mxu0 0
  %326 = vmatpush1.bf16.msra.mxu0 %v303
  %327 = vmatprep.subr.bf16.mxu0 0
  %328 = vmatpush1.bf16.msra.mxu0 %v304
  %329 = vmatprep.subr.bf16.mxu0 0
  %330 = vmatpush1.bf16.msra.mxu0 0
  %331 = vmatprep.subr.bf16.mxu0 0
  %332 = vmatpush1.bf16.msra.mxu0 0
  %333 = vmatprep.subr.bf16.mxu0 0
  %334 = vmatpush1.bf16.msra.mxu0 0
  %335 = vmatprep.subr.bf16.mxu0 0
  %336 = vmatpush1.bf16.msra.mxu0 0
  %337 = vmatprep.subr.bf16.mxu0 0
  %338 = vmatpush1.bf16.msra.mxu0 0
  %339 = vmatprep.subr.bf16.mxu0 0
  %340 = vmatpush1.bf16.msra.mxu0 0
  %341 = vmatprep.subr.bf16.mxu0 0
  %342 = vmatpush1.bf16.msra.mxu0 0
  %343 = vmatprep.subr.bf16.mxu0 0
  %344 = vmatpush1.bf16.msra.mxu0 0
  %345 = vmatprep.mubr.bf16.mxu0 0
  %346 = vmatmul.mubr.bf16.gmra.mrb[0].mxu0 %v240
  %v347 = vpop.f32.mrb[0].mxu0
  %v348 = vadd.f32 %v263, %v347
  %v349 = vpop.f32.mrb[0].mxu0
  %v350 = vpop.f32.mrb[0].mxu0
  %v351 = vadd.f32 %v263, %v350
  %v352 = vpop.f32.mrb[0].mxu0
  %353 = vmatprep.mubr.bf16.mxu0 0
  %354 = vmatmul.mubr.bf16.gmra.mrb[0].mxu0 %v241
  %v355 = vpop.f32.mrb[0].mxu0
  %v356 = vadd.f32 %v263, %v355
  %v357 = vpop.f32.mrb[0].mxu0
  %v358 = vpop.f32.mrb[0].mxu0
  %v359 = vadd.f32 %v263, %v358
  %v360 = vpop.f32.mrb[0].mxu0
  %361 = vdwg.mxu0
  %v362 = vmax.f32 %v348, 0.0
  %v363 = vmax.f32 %v351, 0.0
  %v364 = vmax.f32 %v356, 0.0
  %v365 = vmax.f32 %v359, 0.0
  %366 = vst [vmem:[%s7] sm:$0xff] %v362
  %367 = vst [vmem:[%s7 + $0x8] sm:$0xff] %v363
  %368 = vst [vmem:[%s7 + $0x10] sm:$0xff] %v364
  %369 = vst [vmem:[%s7 + $0x18] sm:$0xff] %v365
  %s370 = smul.u32 0, 32
  %v371 = vlaneseq
  %v372 = vshrl.u32 %v371, 7
  %v373 = vadd.s32 %v372, 8
  %v374 = vadd.s32 %v372, 16
  %v375 = vadd.s32 %v372, 24
  %v376 = vstv %s370
  %v377 = vadd.s32 %v376, %v372
  %v378 = vadd.s32 %v376, %v373
  %v379 = vadd.s32 %v376, %v374
  %v380 = vadd.s32 %v376, %v375
  %s381 = sld [smem:[#allocation3]]
  %v382 = vstv %s381
  %vm383 = vcmp.lt.s32.totalorder %v377, %v382
  %vm384 = vcmp.lt.s32.totalorder %v378, %v382
  %vm385 = vcmp.lt.s32.totalorder %v379, %v382
  %vm386 = vcmp.lt.s32.totalorder %v380, %v382
  %v387 = vsel %vm383, 1, 0
  %v388 = vsel %vm384, 1, 0
  %v389 = vsel %vm385, 1, 0
  %v390 = vsel %vm386, 1, 0
  %vm391 = vcmp.eq.s32.totalorder %v387, 1
  %vm392 = vcmp.eq.s32.totalorder %v388, 1
  %vm393 = vcmp.eq.s32.totalorder %v389, 1
  %vm394 = vcmp.eq.s32.totalorder %v390, 1
  %v395 = vsel %vm391, %v362, 0.0
  %v396 = vsel %vm392, %v363, 0.0
  %v397 = vsel %vm393, %v364, 0.0
  %v398 = vsel %vm394, %v365, 0.0
  %v399 = vadd.f32 %v395, %v396
  %v400 = vadd.f32 %v399, %v397
  %v401 = vadd.f32 %v400, %v398
  %v402 = vrot.slane %v401, 4
  %v403 = vadd.f32 %v401, %v402
  %v404 = vrot.slane %v403, 2
  %v405 = vadd.f32 %v403, %v404
  %v406 = vrot.slane %v405, 1
  %v407 = vadd.f32 %v405, %v406
  %v408 = vmul.f32 %v395, %v395
  %v409 = vmul.f32 %v396, %v396
  %v410 = vmul.f32 %v397, %v397
  %v411 = vmul.f32 %v398, %v398
  %v412 = vadd.f32 %v408, %v409
  %v413 = vadd.f32 %v412, %v410
  %v414 = vadd.f32 %v413, %v411
  %v415 = vrot.slane %v414, 4
  %v416 = vadd.f32 %v414, %v415
  %v417 = vrot.slane %v416, 2
  %v418 = vadd.f32 %v416, %v417
  %v419 = vrot.slane %v418, 1
  %v420 = vadd.f32 %v418, %v419
  %vm421 = vcmask 1040384
  %v422 = vsel %vm421, %v407, %v420
  %423 = vst [vmem:[%s8] sm:$0x3] %v422
  // Predicated region
  $region26: #{gin_node_weight_encoder.4} parent=0 // pred_check
    _
  $region27: #{gin_node_weight_encoder.4} parent=0 // pred_check_branch
    %425 = sbr.rel (0) target = $region29
  $region28: #{gin_node_weight_encoder.4} parent=0 // pred_region
    _
  $region29: #{gin_node_weight_encoder.4} parent=0 // pred_fallthru
    _
  // Predicated region
  $region30: #{gin_node_weight_encoder.4} parent=0 // pred_check
    _
  $region31: #{gin_node_weight_encoder.4} parent=0 // pred_check_branch
    %427 = sbr.rel (0) target = $region33
  $region32: #{gin_node_weight_encoder.4} parent=0 // pred_region
    _
  $region33: #{gin_node_weight_encoder.4} parent=0 // pred_fallthru
    _
  // Predicated region
  $region34: #{gin_node_weight_encoder.4} parent=0 // pred_check
    _
  $region35: #{gin_node_weight_encoder.4} parent=0 // pred_check_branch
    %429 = sbr.rel (0) target = $region37
  $region36: #{gin_node_weight_encoder.4} parent=0 // pred_region
    _
  $region37: #{gin_node_weight_encoder.4} parent=0 // pred_fallthru
    _
  // Predicated region
  $region38: #{gin_node_weight_encoder.4} parent=0 // pred_check
    _
  $region39: #{gin_node_weight_encoder.4} parent=0 // pred_check_branch
    %431 = sbr.rel (0) target = $region41
  $region40: #{gin_node_weight_encoder.4} parent=0 // pred_region
    _
  $region41: #{gin_node_weight_encoder.4} parent=0 // pred_fallthru
    _

</llo_original>
